<compile_context>
chip_gen: v7x
topology: tpu7x:2x2x1
jax: 0.10.0
libtpu: 0.0.40
codegen_flags: <defaults>
</compile_context>

<pallas_src>
import numpy as np
import jax
import jax.numpy as jnp
from jax.experimental import pallas as pl
from jax.experimental.pallas import tpu as pltpu

IP = 1          # power-iteration steps (module default)
EPS = 1e-12


# ----------------------------------------------------------------- kernel 1 --
def power_iter_kernel(w_ref, wt_ref, u_ref, rsig_ref):
    """w_ref: (OC, K) f32, wt_ref: (K, OC) f32 (same weight, pre-transposed in
    the wrapper -> no in-kernel transpose), u_ref: (1, OC) f32.
    Writes rsig_ref (1, 1) = 1 / sigma."""
    w = w_ref[...]
    wt = wt_ref[...]
    u = u_ref[...]
    v = None
    for _ in range(IP):
        v_raw = jnp.dot(u, w, preferred_element_type=jnp.float32)     # (1, K) = W^T u
        v = v_raw * jax.lax.rsqrt(jnp.sum(v_raw * v_raw)) + EPS
        wu = jnp.dot(v, wt, preferred_element_type=jnp.float32)       # (1, OC) = W v
        u = wu * jax.lax.rsqrt(jnp.sum(wu * wu)) + EPS
    wv = jnp.dot(v, wt, preferred_element_type=jnp.float32)           # (1, OC) = W v (final v)
    sigma = jnp.sum(u * wv, keepdims=True)                            # (1, 1)
    rsig_ref[...] = 1.0 / sigma


# ----------------------------------------------------------------- kernel 2 --
def sn_conv_kernel(rsig_ref, w_ref, b_ref, p_ref, o_ref):
    """rsig_ref: (1, 1) f32 in SMEM (1/sigma)
       w_ref:    (OC, K)        compute dtype (f32 or bf16)
       b_ref:    (OC, 1)  f32   bias
       p_ref:    (K, TILE_M)    compute dtype, im2col patch tile
       o_ref:    (OC, TILE_M) f32  -- TILE_M multiple of 128 => unmasked stores."""
    acc = jnp.dot(w_ref[...], p_ref[...], preferred_element_type=jnp.float32)
    o_ref[...] = acc * rsig_ref[0, 0] + b_ref[...]


# ------------------------------------------------------------------ wrapper --
def im2col_kx_m(x, kh, kw, pad):
    """x (N,C,H,W) f32 -> patches (C*kh*kw, N*H*W).
    K ordered (c, i, j) to match PyTorch's weight.view(OC, -1); M ordered (n,h,w)."""
    N, C, H, W = x.shape
    xp = jnp.pad(x, ((0, 0), (0, 0), (pad, pad), (pad, pad)))
    cols = [xp[:, :, i:i + H, j:j + W] for i in range(kh) for j in range(kw)]
    patches = jnp.stack(cols, axis=2)              # (N, C, kh*kw, H, W)
    patches = patches.transpose(1, 2, 0, 3, 4)     # (C, kh*kw, N, H, W)
    return patches.reshape(C * kh * kw, N * H * W)


def spectral_norm_conv_forward(x, w_bar, bias, u, *, tile_m=512,
                               compute_dtype=jnp.float32):
    """x: (N,C,H,W) f32; w_bar: (OC,C,kh,kw); bias: (OC,); u: (OC,)."""
    if IP < 1:
        raise ValueError("IP must be >= 1 (matches the PyTorch module).")
    N, C, H, W = x.shape
    OC, _, kh, kw = w_bar.shape
    pad = kh // 2

    w_mat = w_bar.reshape(OC, -1).astype(jnp.float32)         # (OC, K)
    K = w_mat.shape[1]
    u2 = u.reshape(1, OC).astype(jnp.float32)

    # --- kernel 1: power iteration -> 1/sigma (runs once, all f32) ----------
    rsigma = pl.pallas_call(
        power_iter_kernel,
        out_shape=jax.ShapeDtypeStruct((1, 1), jnp.float32),
        grid=(1,),
        in_specs=[
            pl.BlockSpec((OC, K), lambda i: (0, 0)),
            pl.BlockSpec((K, OC), lambda i: (0, 0)),
            pl.BlockSpec((1, OC), lambda i: (0, 0)),
        ],
        out_specs=pl.BlockSpec((1, 1), lambda i: (0, 0)),
    )(w_mat, w_mat.T, u2)

    # --- kernel 2: conv as GEMM, lane-dense over M = N*H*W ------------------
    patches = im2col_kx_m(x.astype(jnp.float32), kh, kw, pad)  # (K, M)
    M = patches.shape[1]
    tile_m = max(128, min(int(tile_m), pl.cdiv(M, 128) * 128))
    Mp = pl.cdiv(M, tile_m) * tile_m
    if Mp != M:
        patches = jnp.pad(patches, ((0, 0), (0, Mp - M)))
    patches = patches.astype(compute_dtype)
    w_c = w_mat.astype(compute_dtype)
    b2 = bias.reshape(OC, 1).astype(jnp.float32)

    itemsize = jnp.dtype(compute_dtype).itemsize
    cost = pl.CostEstimate(
        flops=2 * Mp * K * OC,
        transcendentals=0,
        bytes_accessed=(Mp * K * itemsize + OC * K * itemsize
                        + OC * Mp * 4 + OC * 4 + 4),
    )

    out2d = pl.pallas_call(
        sn_conv_kernel,
        out_shape=jax.ShapeDtypeStruct((OC, Mp), jnp.float32),
        grid=(Mp // tile_m,),
        in_specs=[
            pl.BlockSpec(memory_space=pltpu.MemorySpace.SMEM),   # 1/sigma scalar
            pl.BlockSpec((OC, K), lambda i: (0, 0)),             # weight (OC, K)
            pl.BlockSpec((OC, 1), lambda i: (0, 0)),             # bias
            pl.BlockSpec((K, tile_m), lambda i: (0, i)),         # patch tile
        ],
        out_specs=pl.BlockSpec((OC, tile_m), lambda i: (0, i)),  # lane-dense M
        compiler_params=pltpu.CompilerParams(
            dimension_semantics=("parallel",)),
        cost_estimate=cost,
    )(rsigma, w_c, b2, patches)

    out2d = out2d[:, :M]                                         # (OC, M)
    return out2d.reshape(OC, N, H, W).transpose(1, 0, 2, 3)      # -> NCHW


# ---------------------------------------------------------------- reference --
def reference_forward(x, w_bar, bias, u):
    """Pure-JAX reference replicating the PyTorch SpectralNorm semantics."""
    OC = w_bar.shape[0]
    w_mat = w_bar.reshape(OC, -1)
    uu = u
    for _ in range(IP):
        v = w_mat.T @ uu
        v = v / jnp.linalg.norm(v) + EPS
        uu = w_mat @ v
        uu = uu / jnp.linalg.norm(uu) + EPS
    sigma = uu @ (w_mat @ v)
    w_sn = w_bar / sigma
    out = jax.lax.conv_general_dilated(
        x, w_sn, window_strides=(1, 1), padding="SAME",
        dimension_numbers=("NCHW", "OIHW", "NCHW"),
        preferred_element_type=jnp.float32)
    return out + bias.reshape(1, -1, 1, 1)


if __name__ == "__main__":
    key = jax.random.PRNGKey(0)
    kx, kw_, kb, ku = jax.random.split(key, 4)

    N, C, H, W = 2, 4, 16, 16
    OC, kh, kwid = 8, 3, 3

    x = jax.random.normal(kx, (N, C, H, W), dtype=jnp.float32)
    w_bar = jax.random.normal(kw_, (OC, C, kh, kwid), dtype=jnp.float32) * 0.1
    bias = jax.random.normal(kb, (OC,), dtype=jnp.float32) * 0.1
    u = jax.random.normal(ku, (OC,), dtype=jnp.float32)

    ref = jax.block_until_ready(reference_forward(x, w_bar, bias, u))

    # f32 path: tile_m=256 -> 2 pipelined grid steps at this toy size
    # (for production M use tile_m >= 512).
    out = jax.block_until_ready(
        spectral_norm_conv_forward(x, w_bar, bias, u, tile_m=256))
    assert out.shape == (N, OC, H, W), out.shape
    np.testing.assert_allclose(np.asarray(out), np.asarray(ref),
                               rtol=1e-3, atol=1e-3)

    # bf16 GEMM operands (v6e/v7x MXU-native, f32 accumulate): looser tolerance.
    out_bf16 = jax.block_until_ready(
        spectral_norm_conv_forward(x, w_bar, bias, u, tile_m=256,
                                   compute_dtype=jnp.bfloat16))
    np.testing.assert_allclose(np.asarray(out_bf16), np.asarray(ref),
                               rtol=2e-2, atol=2e-2)

    print("KERNEL_OK")
</pallas_src>

<mosaic_0001>
module attributes {stable_mosaic.version = 11 : i64} {
  func.func @power_iter_kernel(%arg0: i32, %arg1: memref<8x36xf32, #tpu.memory_space<vmem>>, %arg2: memref<36x8xf32, #tpu.memory_space<vmem>>, %arg3: memref<1x8xf32, #tpu.memory_space<vmem>>, %arg4: memref<1x1xf32, #tpu.memory_space<vmem>>) attributes {dimension_semantics = [#tpu.dimension_semantics<arbitrary>], iteration_bounds = array<i64: 1>, scalar_prefetch = 0 : i64, scratch_operands = 0 : i64, tpu.core_type = #tpu.core_type<tc>, window_params = [{pipeline_mode = #tpu.pipeline_mode<synchronous>, transform_indices = @transform_0, window_bounds = array<i64: 8, 36>}, {pipeline_mode = #tpu.pipeline_mode<synchronous>, transform_indices = @transform_1, window_bounds = array<i64: 36, 8>}, {pipeline_mode = #tpu.pipeline_mode<synchronous>, transform_indices = @transform_2, window_bounds = array<i64: 1, 8>}, {pipeline_mode = #tpu.pipeline_mode<synchronous>, transform_indices = @transform_3, window_bounds = array<i64: 1, 1>}]} {
    %c0 = arith.constant 0 : index
    %c0_0 = arith.constant 0 : index
    %0 = vector.load %arg1[%c0, %c0_0] : memref<8x36xf32, #tpu.memory_space<vmem>>, vector<8x36xf32>
    %c0_1 = arith.constant 0 : index
    %c0_2 = arith.constant 0 : index
    %1 = vector.load %arg2[%c0_1, %c0_2] : memref<36x8xf32, #tpu.memory_space<vmem>>, vector<36x8xf32>
    %c0_3 = arith.constant 0 : index
    %c0_4 = arith.constant 0 : index
    %2 = vector.load %arg3[%c0_3, %c0_4] : memref<1x8xf32, #tpu.memory_space<vmem>>, vector<1x8xf32>
    %cst = arith.constant dense<0.000000e+00> : vector<1x36xf32>
    %3 = tpu.matmul %2, %0, %cst {dimension_numbers = #tpu.dot_dimension_numbers<[1], [0], [0], [1], [0, 0, 1, 1], [], []>} : vector<1x8xf32>, vector<8x36xf32>, vector<1x36xf32> -> vector<1x36xf32>
    %4 = arith.mulf %3, %3 : vector<1x36xf32>
    %5 = vector.shape_cast %4 : vector<1x36xf32> to vector<1x1x36xf32>
    %cst_5 = arith.constant dense<0.000000e+00> : vector<1xf32>
    %6 = vector.multi_reduction <add>, %5, %cst_5 [1, 2] : vector<1x1x36xf32> to vector<1xf32>
    %7 = vector.shape_cast %6 : vector<1xf32> to vector<1x1x1xf32>
    %8 = vector.extract %7[0, 0, 0] : f32 from vector<1x1x1xf32>
    %9 = math.rsqrt %8 : f32
    %10 = vector.broadcast %9 : f32 to vector<1x36xf32>
    %11 = arith.mulf %3, %10 : vector<1x36xf32>
    %cst_6 = arith.constant 9.99999996E-13 : f32
    %12 = vector.broadcast %cst_6 : f32 to vector<1x36xf32>
    %13 = arith.addf %11, %12 : vector<1x36xf32>
    %cst_7 = arith.constant dense<0.000000e+00> : vector<1x8xf32>
    %14 = tpu.matmul %13, %1, %cst_7 {dimension_numbers = #tpu.dot_dimension_numbers<[1], [0], [0], [1], [0, 0, 1, 1], [], []>} : vector<1x36xf32>, vector<36x8xf32>, vector<1x8xf32> -> vector<1x8xf32>
    %15 = arith.mulf %14, %14 : vector<1x8xf32>
    %16 = vector.shape_cast %15 : vector<1x8xf32> to vector<1x1x8xf32>
    %cst_8 = arith.constant dense<0.000000e+00> : vector<1xf32>
    %17 = vector.multi_reduction <add>, %16, %cst_8 [1, 2] : vector<1x1x8xf32> to vector<1xf32>
    %18 = vector.shape_cast %17 : vector<1xf32> to vector<1x1x1xf32>
    %19 = vector.extract %18[0, 0, 0] : f32 from vector<1x1x1xf32>
    %20 = math.rsqrt %19 : f32
    %21 = vector.broadcast %20 : f32 to vector<1x8xf32>
    %22 = arith.mulf %14, %21 : vector<1x8xf32>
    %cst_9 = arith.constant 9.99999996E-13 : f32
    %23 = vector.broadcast %cst_9 : f32 to vector<1x8xf32>
    %24 = arith.addf %22, %23 : vector<1x8xf32>
    %cst_10 = arith.constant dense<0.000000e+00> : vector<1x8xf32>
    %25 = tpu.matmul %13, %1, %cst_10 {dimension_numbers = #tpu.dot_dimension_numbers<[1], [0], [0], [1], [0, 0, 1, 1], [], []>} : vector<1x36xf32>, vector<36x8xf32>, vector<1x8xf32> -> vector<1x8xf32>
    %26 = arith.mulf %24, %25 : vector<1x8xf32>
    %27 = vector.shape_cast %26 : vector<1x8xf32> to vector<1x1x8xf32>
    %cst_11 = arith.constant dense<0.000000e+00> : vector<1xf32>
    %28 = vector.multi_reduction <add>, %27, %cst_11 [1, 2] : vector<1x1x8xf32> to vector<1xf32>
    %29 = vector.shape_cast %28 : vector<1xf32> to vector<1x1x1xf32>
    %30 = vector.extract %29[0, 0, 0] : f32 from vector<1x1x1xf32>
    %31 = vector.broadcast %30 : f32 to vector<1x1xf32>
    %cst_12 = arith.constant 1.000000e+00 : f32
    %32 = vector.broadcast %cst_12 : f32 to vector<1x1xf32>
    %33 = arith.divf %32, %31 : vector<1x1xf32>
    %c0_13 = arith.constant 0 : index
    %c0_14 = arith.constant 0 : index
    %34 = vector.load %arg4[%c0_13, %c0_14] : memref<1x1xf32, #tpu.memory_space<vmem>>, vector<1x1xf32>
    tpu.vector_store %arg4[%c0_13, %c0_14], %33 {strides = array<i32>} : memref<1x1xf32, #tpu.memory_space<vmem>>, vector<1x1xf32>,
    return
  }
  func.func @transform_0(%arg0: i32) -> (i32, i32) {
    %c0_i32 = arith.constant 0 : i32
    %c0_i32_0 = arith.constant 0 : i32
    %c0_i32_1 = arith.constant 0 : i32
    return %c0_i32, %c0_i32_0 : i32, i32
  }
  func.func @transform_1(%arg0: i32) -> (i32, i32) {
    %c0_i32 = arith.constant 0 : i32
    %c0_i32_0 = arith.constant 0 : i32
    %c0_i32_1 = arith.constant 0 : i32
    return %c0_i32, %c0_i32_0 : i32, i32
  }
  func.func @transform_2(%arg0: i32) -> (i32, i32) {
    %c0_i32 = arith.constant 0 : i32
    %c0_i32_0 = arith.constant 0 : i32
    %c0_i32_1 = arith.constant 0 : i32
    return %c0_i32, %c0_i32_0 : i32, i32
  }
  func.func @transform_3(%arg0: i32) -> (i32, i32) {
    %c0_i32 = arith.constant 0 : i32
    %c0_i32_0 = arith.constant 0 : i32
    %c0_i32_1 = arith.constant 0 : i32
    return %c0_i32, %c0_i32_0 : i32, i32
  }
}

</mosaic_0001>

<llo_original>
// kernel: tpu_custom_call.1
$region0: #{tpu_custom_call.1}
  #allocation0 [shape = 'u32[]', space=smem, size = 0x4, offset = 0x4, fixed_abs, tag = 'smem constant byte address 0x4 - core index']
  #allocation1 [shape = 'u32[144,128]{1,0:T(1,128)}', space=vmem, size = 0x12000, scoped, tag = 'internal scratch']
  %s0 = inlined_call_operand.vmem [shape: f32[8,36], index: 0, kind: input, shape index: {}]
  %s1 = inlined_call_operand.vmem [shape: f32[36,8], index: 1, kind: input, shape index: {}]
  %s2 = inlined_call_operand.vmem [shape: f32[1,8], index: 2, kind: input, shape index: {}]
  %s3 = inlined_call_operand.hbm [shape: f32[1,1], index: 3, kind: output, shape index: {}]
  %s4 = sld [smem:[#allocation0]]
  $region22: #{tpu_custom_call.1} parent=0
    _
  %s6 = ssub.s32 1, %s4
  %s7 = scalar_select 0, %s6, %s4
  $region1: #{tpu_custom_call.1} parent=0
    #allocation2 [shape = 'u8[512]{0}', space=vmem, size = 0x400, scoped, tag = 'output window, operand 0, single buffered']
    #allocation3 [shape = 's32[1]{0}', space=sflag, size = 0x4, scoped, tag = 'scoped memory for tpu_custom_call.1']
    %8 = vsyncpa [#allocation3], 0
    // Predicated region
    $region2: #{tpu_custom_call.1} parent=1 // pred_check
      _
    $region3: #{tpu_custom_call.1} parent=1 // pred_check_branch
      %10 = sbr.rel (0) target = $region5
    $region4: #{tpu_custom_call.1} parent=1 // pred_region
      _
    $region5: #{tpu_custom_call.1} parent=1 // pred_fallthru
      _
    // Predicated region
    $region6: #{tpu_custom_call.1} parent=1 // pred_check
      _
    $region7: #{tpu_custom_call.1} parent=1 // pred_check_branch
      %12 = sbr.rel (0) target = $region9
    $region8: #{tpu_custom_call.1} parent=1 // pred_region
      _
    $region9: #{tpu_custom_call.1} parent=1 // pred_fallthru
      _
    // Predicated region
    $region10: #{tpu_custom_call.1} parent=1 // pred_check
      _
    $region11: #{tpu_custom_call.1} parent=1 // pred_check_branch
      %14 = sbr.rel (0) target = $region13
    $region12: #{tpu_custom_call.1} parent=1 // pred_region
      _
    $region13: #{tpu_custom_call.1} parent=1 // pred_fallthru
      _
    %v15 = vld [vmem:[%s0] sm:$0xff]
    %v16 = vld [vmem:[%s1] sm:$0xff]
    %v17 = vld [vmem:[%s1 + $0x8] sm:$0xff]
    %v18 = vld [vmem:[%s1 + $0x10] sm:$0xff]
    %v19 = vld [vmem:[%s1 + $0x18] sm:$0xff]
    %v20 = vld [vmem:[%s1 + $0x20] sm:$0xf]
    %v21 = vld [vmem:[%s2] sm:$0x1]
    %vm22 = vcmask 64512
    %v24 = vsel %vm22, %v21, 0
    %26 = vmatprep.subr.mxu0 0.0
    %27 = vmatpush1.msra.mxu0 %v15
    %28 = vmatprep.subr.mxu0 0.0
    %29 = vmatpush1.msra.mxu0 0.0
    %30 = vmatprep.subr.mxu0 0.0
    %31 = vmatpush1.msra.mxu0 0.0
    %32 = vmatprep.subr.mxu0 0.0
    %33 = vmatpush1.msra.mxu0 0.0
    %34 = vmatprep.subr.mxu0 0.0
    %35 = vmatpush1.msra.mxu0 0.0
    %36 = vmatprep.subr.mxu0 0.0
    %37 = vmatpush1.msra.mxu0 0.0
    %38 = vmatprep.subr.mxu0 0.0
    %39 = vmatpush1.msra.mxu0 0.0
    %40 = vmatprep.subr.mxu0 0.0
    %41 = vmatpush1.msra.mxu0 0.0
    %42 = vmatprep.subr.mxu0 0.0
    %43 = vmatpush1.msra.mxu0 0.0
    %44 = vmatprep.subr.mxu0 0.0
    %45 = vmatpush1.msra.mxu0 0.0
    %46 = vmatprep.subr.mxu0 0.0
    %47 = vmatpush1.msra.mxu0 0.0
    %48 = vmatprep.subr.mxu0 0.0
    %49 = vmatpush1.msra.mxu0 0.0
    %50 = vmatprep.subr.mxu0 0.0
    %51 = vmatpush1.msra.mxu0 0.0
    %52 = vmatprep.subr.mxu0 0.0
    %53 = vmatpush1.msra.mxu0 0.0
    %54 = vmatprep.subr.mxu0 0.0
    %55 = vmatpush1.msra.mxu0 0.0
    %56 = vmatprep.subr.mxu0 0.0
    %57 = vmatpush1.msra.mxu0 0.0
    %58 = vmatprep.subr.mxu0 0.0
    %59 = vmatpush1.msra.mxu0 0.0
    %60 = vmatprep.subr.mxu0 0.0
    %61 = vmatpush1.msra.mxu0 0.0
    %62 = vmatprep.subr.mxu0 0.0
    %63 = vmatpush1.msra.mxu0 0.0
    %64 = vmatprep.subr.mxu0 0.0
    %65 = vmatpush1.msra.mxu0 0.0
    %66 = vmatprep.subr.mxu0 0.0
    %67 = vmatpush1.msra.mxu0 0.0
    %68 = vmatprep.subr.mxu0 0.0
    %69 = vmatpush1.msra.mxu0 0.0
    %70 = vmatprep.subr.mxu0 0.0
    %71 = vmatpush1.msra.mxu0 0.0
    %72 = vmatprep.subr.mxu0 0.0
    %73 = vmatpush1.msra.mxu0 0.0
    %74 = vmatprep.subr.mxu0 0.0
    %75 = vmatpush1.msra.mxu0 0.0
    %76 = vmatprep.subr.mxu0 0.0
    %77 = vmatpush1.msra.mxu0 0.0
    %78 = vmatprep.subr.mxu0 0.0
    %79 = vmatpush1.msra.mxu0 0.0
    %80 = vmatprep.subr.mxu0 0.0
    %81 = vmatpush1.msra.mxu0 0.0
    %82 = vmatprep.subr.mxu0 0.0
    %83 = vmatpush1.msra.mxu0 0.0
    %84 = vmatprep.subr.mxu0 0.0
    %85 = vmatpush1.msra.mxu0 0.0
    %86 = vmatprep.subr.mxu0 0.0
    %87 = vmatpush1.msra.mxu0 0.0
    %88 = vmatprep.subr.mxu0 0.0
    %89 = vmatpush1.msra.mxu0 0.0
    %90 = vmatprep.mubr.f32.mxu0 0.0
    %91 = vmatmul.mubr.f32.gmra.mrb[0].mxu0 %v24
    %v92 = vpop.f32.mrb[0].mxu0
    %v93 = vadd.f32 0.0, %v92
    %v94 = vpop.f32.mrb[0].mxu0
    %95 = vdwg.mxu0
    %v96 = vmul.f32 %v93, %v93
    %vm97 = vcmask 286720
    %v98 = vsel %vm97, %v96, 0.0
    %99 = vadd.xlane.f32.xlu0 %v98
    %v100 = vpop.xlane.xlu0 %99
    %v101 = vrot.slane %v100, 4
    %v102 = vadd.f32 %v100, %v101
    %v103 = vrot.slane %v102, 2
    %v104 = vadd.f32 %v102, %v103
    %v105 = vrot.slane %v104, 1
    %v106 = vadd.f32 %v104, %v105
    %s107 = vtos %v106
    %v108 = vstv %s107
    %v109 = vrsqrt.pop %v108
    %s110 = vtos %v109
    %v111 = vstv %s110
    %v112 = vmul.f32 %v93, %v111
    %v113 = vadd.f32 %v112, 1e-12
    %vm114 = vcmask 293888
    %v116 = vsel %vm114, %v113, 0
    %vm118 = vcmask 1043456
    %v120 = vsel %vm118, %v20, 0
    %122 = vmatprep.subr.mxu0 0.0
    %123 = vmatpush1.msra.mxu0 %v16
    %124 = vmatprep.subr.mxu0 0.0
    %125 = vmatpush1.msra.mxu0 %v17
    %126 = vmatprep.subr.mxu0 0.0
    %127 = vmatpush1.msra.mxu0 %v18
    %128 = vmatprep.subr.mxu0 0.0
    %129 = vmatpush1.msra.mxu0 %v19
    %130 = vmatprep.subr.mxu0 0.0
    %131 = vmatpush1.msra.mxu0 %v120
    %132 = vmatprep.subr.mxu0 0.0
    %133 = vmatpush1.msra.mxu0 0.0
    %134 = vmatprep.subr.mxu0 0.0
    %135 = vmatpush1.msra.mxu0 0.0
    %136 = vmatprep.subr.mxu0 0.0
    %137 = vmatpush1.msra.mxu0 0.0
    %138 = vmatprep.subr.mxu0 0.0
    %139 = vmatpush1.msra.mxu0 0.0
    %140 = vmatprep.subr.mxu0 0.0
    %141 = vmatpush1.msra.mxu0 0.0
    %142 = vmatprep.subr.mxu0 0.0
    %143 = vmatpush1.msra.mxu0 0.0
    %144 = vmatprep.subr.mxu0 0.0
    %145 = vmatpush1.msra.mxu0 0.0
    %146 = vmatprep.subr.mxu0 0.0
    %147 = vmatpush1.msra.mxu0 0.0
    %148 = vmatprep.subr.mxu0 0.0
    %149 = vmatpush1.msra.mxu0 0.0
    %150 = vmatprep.subr.mxu0 0.0
    %151 = vmatpush1.msra.mxu0 0.0
    %152 = vmatprep.subr.mxu0 0.0
    %153 = vmatpush1.msra.mxu0 0.0
    %154 = vmatprep.subr.mxu0 0.0
    %155 = vmatpush1.msra.mxu0 0.0
    %156 = vmatprep.subr.mxu0 0.0
    %157 = vmatpush1.msra.mxu0 0.0
    %158 = vmatprep.subr.mxu0 0.0
    %159 = vmatpush1.msra.mxu0 0.0
    %160 = vmatprep.subr.mxu0 0.0
    %161 = vmatpush1.msra.mxu0 0.0
    %162 = vmatprep.subr.mxu0 0.0
    %163 = vmatpush1.msra.mxu0 0.0
    %164 = vmatprep.subr.mxu0 0.0
    %165 = vmatpush1.msra.mxu0 0.0
    %166 = vmatprep.subr.mxu0 0.0
    %167 = vmatpush1.msra.mxu0 0.0
    %168 = vmatprep.subr.mxu0 0.0
    %169 = vmatpush1.msra.mxu0 0.0
    %170 = vmatprep.subr.mxu0 0.0
    %171 = vmatpush1.msra.mxu0 0.0
    %172 = vmatprep.subr.mxu0 0.0
    %173 = vmatpush1.msra.mxu0 0.0
    %174 = vmatprep.subr.mxu0 0.0
    %175 = vmatpush1.msra.mxu0 0.0
    %176 = vmatprep.subr.mxu0 0.0
    %177 = vmatpush1.msra.mxu0 0.0
    %178 = vmatprep.subr.mxu0 0.0
    %179 = vmatpush1.msra.mxu0 0.0
    %180 = vmatprep.subr.mxu0 0.0
    %181 = vmatpush1.msra.mxu0 0.0
    %182 = vmatprep.subr.mxu0 0.0
    %183 = vmatpush1.msra.mxu0 0.0
    %184 = vmatprep.subr.mxu0 0.0
    %185 = vmatpush1.msra.mxu0 0.0
    %186 = vmatprep.mubr.f32.mxu0 0.0
    %187 = vmatmul.mubr.f32.gmra.mrb[0].mxu0 %v116
    %v188 = vpop.f32.mrb[0].mxu0
    %v189 = vadd.f32 0.0, %v188
    %v190 = vpop.f32.mrb[0].mxu0
    %191 = vdwg.mxu0
    %v192 = vmul.f32 %v189, %v189
    %vm193 = vcmask 57344
    %v194 = vsel %vm193, %v192, 0.0
    %195 = vadd.xlane.f32.xlu0 %v194
    %v196 = vpop.xlane.xlu0 %195
    %v197 = vrot.slane %v196, 4
    %v198 = vadd.f32 %v196, %v197
    %v199 = vrot.slane %v198, 2
    %v200 = vadd.f32 %v198, %v199
    %v201 = vrot.slane %v200, 1
    %v202 = vadd.f32 %v200, %v201
    %s203 = vtos %v202
    %v204 = vstv %s203
    %v205 = vrsqrt.pop %v204
    %s206 = vtos %v205
    %v207 = vstv %s206
    %v208 = vmul.f32 %v189, %v207
    %v209 = vadd.f32 %v208, 1e-12
    %v210 = vmul.f32 %v209, %v189
    %v211 = vsel %vm193, %v210, 0.0
    %212 = vadd.xlane.f32.xlu0 %v211
    %v213 = vpop.xlane.xlu0 %212
    %v214 = vrot.slane %v213, 4
    %v215 = vadd.f32 %v213, %v214
    %v216 = vrot.slane %v215, 2
    %v217 = vadd.f32 %v215, %v216
    %v218 = vrot.slane %v217, 1
    %v219 = vadd.f32 %v217, %v218
    %s220 = vtos %v219
    %v221 = vstv %s220
    %v222 = vrcp.pop %v221
    %v223 = vmul.f32 1.0, %v222
    %vm224 = vcmask 0
    %225 = vst.msk [vmem:[#allocation2] sm:$0x1] %vm224, %v223
    // Predicated region
    $region14: #{tpu_custom_call.1} parent=1 // pred_check
      _
    $region15: #{tpu_custom_call.1} parent=1 // pred_check_branch
      %227 = sbr.rel (0) target = $region17
    $region16: #{tpu_custom_call.1} parent=1 // pred_region
      %s229 = ssub.s32 16, 16
      %230 = vsyncadd [#allocation3], %s229
      %s232 = sshll.u32 [#allocation2], 4
      %s233 = int_to_ptr.vmem [resolvable:$true] %s232
      %235 = dma.vmem_to_hbm [thread:$0]  %s233, 16, %s3, [#allocation3]
    $region17: #{tpu_custom_call.1} parent=1 // pred_fallthru
      _
    // Predicated region
    $region18: #{tpu_custom_call.1} parent=1 // pred_check
      _
    $region19: #{tpu_custom_call.1} parent=1 // pred_check_branch
      %237 = sbr.rel (0) target = $region21
    $region20: #{tpu_custom_call.1} parent=1 // pred_region
      %238 = dma.done [#allocation3], 16
    $region21: #{tpu_custom_call.1} parent=1 // pred_fallthru
      _
    %239 = vsyncpa [#allocation3], 1

</llo_original>
